<compile_context>
chip_gen: v7x
topology: tpu7x:2x2x1
jax: 0.10.0
libtpu: 0.0.40
codegen_flags: <defaults>
</compile_context>

<pallas_src>
import jax
import jax.numpy as jnp
from jax.experimental import pallas as pl
from jax.experimental.pallas import tpu as pltpu


def _round_up(n, m):
    return ((n + m - 1) // m) * m


def critic_mlp_kernel(x_ref, w1_ref, b1_ref, w2_ref, b2_ref, wh_ref, bh_ref, out_ref):
    """One batch tile of the fused critic MLP.

    x_ref  : [TB, S]  f32   (batch tile of states)
    w1_ref : [S,  H]  bf16    b1_ref : [1, H] f32
    w2_ref : [H,  H]  bf16    b2_ref : [1, H] f32
    wh_ref : [1,  H]  f32   (head weight laid out as a row)
    bh_ref : [1,  1]  f32   (scalar head bias, SMEM)
    out_ref: [TB, 1]  f32
    """
    # Layer 1: bf16 MXU inputs, f32 accumulate; bias-add + ReLU stay f32 on the VPU.
    x = x_ref[...].astype(jnp.bfloat16)
    h1 = jnp.dot(x, w1_ref[...], preferred_element_type=jnp.float32) + b1_ref[...]
    h1 = jnp.maximum(h1, 0.0)

    # Layer 2.
    h2 = jnp.dot(h1.astype(jnp.bfloat16), w2_ref[...],
                 preferred_element_type=jnp.float32) + b2_ref[...]
    h2 = jnp.maximum(h2, 0.0)

    # Head (out_features == 1): VPU multiply + XLU lane reduction instead of an N=1 MXU
    # matmul.  SMEM scalar bias added on the way out.
    v = jnp.sum(h2 * wh_ref[...], axis=-1, keepdims=True) + bh_ref[0, 0]
    out_ref[...] = v.astype(out_ref.dtype)


def init_params(key, state_size, hidden=64):
    """Deterministic synthetic parameters; weights stored [in, out]
    (i.e. transposed relative to torch.nn.Linear.weight)."""
    k1, k2, k3 = jax.random.split(key, 3)
    w1 = jax.random.normal(k1, (state_size, hidden), jnp.float32) * (1.0 / jnp.sqrt(state_size))
    b1 = jnp.zeros((1, hidden), jnp.float32)
    w2 = jax.random.normal(k2, (hidden, hidden), jnp.float32) * (1.0 / jnp.sqrt(hidden))
    b2 = jnp.zeros((1, hidden), jnp.float32)
    wh = jax.random.normal(k3, (hidden, 1), jnp.float32) * (1.0 / jnp.sqrt(hidden))
    bh = jnp.zeros((1, 1), jnp.float32)
    return (w1, b1, w2, b2, wh, bh)


def prepare_params(params, lane=128):
    """One-time prep: zero-pad hidden to a multiple of 128 (numerically transparent),
    cast matmul weights to bf16, and lay the head weight out as a row for the VPU head."""
    w1, b1, w2, b2, wh, bh = params
    _, h = w1.shape
    hp = _round_up(h, lane)
    ph = hp - h
    w1p = jnp.pad(w1, ((0, 0), (0, ph))).astype(jnp.bfloat16)
    b1p = jnp.pad(b1, ((0, 0), (0, ph)))
    w2p = jnp.pad(w2, ((0, ph), (0, ph))).astype(jnp.bfloat16)
    b2p = jnp.pad(b2, ((0, 0), (0, ph)))
    whp = jnp.pad(wh, ((0, ph), (0, 0))).T          # [1, Hp], stays f32 (VPU head)
    return (w1p, b1p, w2p, b2p, whp, bh)


def critic_forward(x, kparams, *, block_b=512):
    """x: [B, state_size] f32 -> value [B, 1] f32 (kparams from prepare_params)."""
    w1, b1, w2, b2, wh, bh = kparams
    B, S = x.shape
    Hp = w1.shape[1]

    # Batch tile: multiple of 8 sublanes, capped by block_b (~512 rows hides the ~0.35us
    # per-grid-step overhead); tiny batches collapse to a single small tile.  Pad the
    # batch so every tile is full (padded rows are sliced off at the end).
    tb = min(block_b, _round_up(B, 8))
    Bp = _round_up(B, tb)
    if Bp != B:
        x = jnp.pad(x, ((0, Bp - B), (0, 0)))

    res = pl.pallas_call(
        critic_mlp_kernel,
        out_shape=jax.ShapeDtypeStruct((Bp, 1), jnp.float32),
        grid=(Bp // tb,),
        in_specs=[
            pl.BlockSpec((tb, S), lambda i: (i, 0)),        # x: streamed batch tiles
            pl.BlockSpec((S, Hp), lambda i: (0, 0)),        # w1: resident across tiles
            pl.BlockSpec((1, Hp), lambda i: (0, 0)),        # b1
            pl.BlockSpec((Hp, Hp), lambda i: (0, 0)),       # w2
            pl.BlockSpec((1, Hp), lambda i: (0, 0)),        # b2
            pl.BlockSpec((1, Hp), lambda i: (0, 0)),        # wh row
            pl.BlockSpec(memory_space=pltpu.MemorySpace.SMEM),  # bh scalar
        ],
        out_specs=pl.BlockSpec((tb, 1), lambda i: (i, 0)),
        compiler_params=pltpu.CompilerParams(
            dimension_semantics=("parallel",)),             # batch tiles across TCs (v7x)
    )(x, w1, b1, w2, b2, wh, bh)
    return res[:B]


def critic_forward_ref(x, params):
    """Pure-JAX reference with the same numerics (bf16 MXU inputs, f32 accumulate)."""
    w1, b1, w2, b2, wh, bh = params
    xb, w1b, w2b = x.astype(jnp.bfloat16), w1.astype(jnp.bfloat16), w2.astype(jnp.bfloat16)
    h1 = jnp.maximum(jnp.dot(xb, w1b, preferred_element_type=jnp.float32) + b1, 0.0)
    h2 = jnp.maximum(jnp.dot(h1.astype(jnp.bfloat16), w2b,
                             preferred_element_type=jnp.float32) + b2, 0.0)
    return h2 @ wh + bh


if __name__ == "__main__":
    key = jax.random.PRNGKey(0)
    kx, kp = jax.random.split(key)

    batch, state_size, hidden = 2, 8, 64
    x = jax.random.normal(kx, (batch, state_size), jnp.float32)
    params = init_params(kp, state_size, hidden)
    kparams = prepare_params(params)

    # Tiny-batch path (single padded tile).
    value = jax.block_until_ready(critic_forward(x, kparams))
    ref = critic_forward_ref(x, params)
    assert value.shape == (batch, 1)
    assert jnp.allclose(value, ref, atol=1e-4, rtol=1e-4)

    # Multi-tile pipelined path (4 batch tiles of 256 rows).
    xb = jax.random.normal(kx, (1024, state_size), jnp.float32)
    vb = jax.block_until_ready(critic_forward(xb, kparams, block_b=256))
    rb = critic_forward_ref(xb, params)
    assert vb.shape == (1024, 1)
    assert jnp.allclose(vb, rb, atol=1e-4, rtol=1e-4)

    print("KERNEL_OK")
</pallas_src>

<mosaic_0001>
module attributes {stable_mosaic.version = 11 : i64} {
  func.func @critic_mlp_kernel(%arg0: i32, %arg1: memref<8x8xf32, #tpu.memory_space<vmem>>, %arg2: memref<8x128xbf16, #tpu.memory_space<vmem>>, %arg3: memref<1x128xf32, #tpu.memory_space<vmem>>, %arg4: memref<128x128xbf16, #tpu.memory_space<vmem>>, %arg5: memref<1x128xf32, #tpu.memory_space<vmem>>, %arg6: memref<1x128xf32, #tpu.memory_space<vmem>>, %arg7: memref<1x1xf32, #tpu.memory_space<smem>>, %arg8: memref<8x1xf32, #tpu.memory_space<vmem>>) attributes {dimension_semantics = [#tpu.dimension_semantics<parallel>], iteration_bounds = array<i64: 1>, scalar_prefetch = 0 : i64, scratch_operands = 0 : i64, tpu.core_type = #tpu.core_type<tc>, window_params = [{transform_indices = @transform_0, window_bounds = array<i64: 8, 8>}, {pipeline_mode = #tpu.pipeline_mode<synchronous>, transform_indices = @transform_1, window_bounds = array<i64: 8, 128>}, {pipeline_mode = #tpu.pipeline_mode<synchronous>, transform_indices = @transform_2, window_bounds = array<i64: 1, 128>}, {pipeline_mode = #tpu.pipeline_mode<synchronous>, transform_indices = @transform_3, window_bounds = array<i64: 128, 128>}, {pipeline_mode = #tpu.pipeline_mode<synchronous>, transform_indices = @transform_4, window_bounds = array<i64: 1, 128>}, {pipeline_mode = #tpu.pipeline_mode<synchronous>, transform_indices = @transform_5, window_bounds = array<i64: 1, 128>}, {transform_indices = @transform_6, window_bounds = array<i64: 1, 1>}, {transform_indices = @transform_7, window_bounds = array<i64: 8, 1>}]} {
    %c0 = arith.constant 0 : index
    %c0_0 = arith.constant 0 : index
    %0 = vector.load %arg1[%c0, %c0_0] : memref<8x8xf32, #tpu.memory_space<vmem>>, vector<8x8xf32>
    %1 = arith.truncf %0 : vector<8x8xf32> to vector<8x8xbf16>
    %c0_1 = arith.constant 0 : index
    %c0_2 = arith.constant 0 : index
    %2 = vector.load %arg2[%c0_1, %c0_2] : memref<8x128xbf16, #tpu.memory_space<vmem>>, vector<8x128xbf16>
    %cst = arith.constant dense<0.000000e+00> : vector<8x128xf32>
    %3 = tpu.matmul %1, %2, %cst {dimension_numbers = #tpu.dot_dimension_numbers<[1], [0], [0], [1], [0, 0, 1, 1], [], []>} : vector<8x8xbf16>, vector<8x128xbf16>, vector<8x128xf32> -> vector<8x128xf32>
    %c0_3 = arith.constant 0 : index
    %c0_4 = arith.constant 0 : index
    %4 = vector.load %arg3[%c0_3, %c0_4] : memref<1x128xf32, #tpu.memory_space<vmem>>, vector<1x128xf32>
    %5 = vector.broadcast %4 : vector<1x128xf32> to vector<8x128xf32>
    %6 = arith.addf %3, %5 : vector<8x128xf32>
    %cst_5 = arith.constant 0.000000e+00 : f32
    %7 = vector.broadcast %cst_5 : f32 to vector<8x128xf32>
    %8 = arith.maximumf %6, %7 : vector<8x128xf32>
    %9 = arith.truncf %8 : vector<8x128xf32> to vector<8x128xbf16>
    %c0_6 = arith.constant 0 : index
    %c0_7 = arith.constant 0 : index
    %10 = vector.load %arg4[%c0_6, %c0_7] : memref<128x128xbf16, #tpu.memory_space<vmem>>, vector<128x128xbf16>
    %cst_8 = arith.constant dense<0.000000e+00> : vector<8x128xf32>
    %11 = tpu.matmul %9, %10, %cst_8 {dimension_numbers = #tpu.dot_dimension_numbers<[1], [0], [0], [1], [0, 0, 1, 1], [], []>} : vector<8x128xbf16>, vector<128x128xbf16>, vector<8x128xf32> -> vector<8x128xf32>
    %c0_9 = arith.constant 0 : index
    %c0_10 = arith.constant 0 : index
    %12 = vector.load %arg5[%c0_9, %c0_10] : memref<1x128xf32, #tpu.memory_space<vmem>>, vector<1x128xf32>
    %13 = vector.broadcast %12 : vector<1x128xf32> to vector<8x128xf32>
    %14 = arith.addf %11, %13 : vector<8x128xf32>
    %cst_11 = arith.constant 0.000000e+00 : f32
    %15 = vector.broadcast %cst_11 : f32 to vector<8x128xf32>
    %16 = arith.maximumf %14, %15 : vector<8x128xf32>
    %c0_12 = arith.constant 0 : index
    %c0_13 = arith.constant 0 : index
    %17 = vector.load %arg6[%c0_12, %c0_13] : memref<1x128xf32, #tpu.memory_space<vmem>>, vector<1x128xf32>
    %18 = vector.broadcast %17 : vector<1x128xf32> to vector<8x128xf32>
    %19 = arith.mulf %16, %18 : vector<8x128xf32>
    %cst_14 = arith.constant dense<0.000000e+00> : vector<8xf32>
    %20 = vector.multi_reduction <add>, %19, %cst_14 [1] : vector<8x128xf32> to vector<8xf32>
    %21 = vector.shape_cast %20 : vector<8xf32> to vector<8x1xf32>
    %c0_15 = arith.constant 0 : index
    %c0_16 = arith.constant 0 : index
    %22 = memref.load %arg7[%c0_15, %c0_16] : memref<1x1xf32, #tpu.memory_space<smem>>
    %23 = vector.broadcast %22 : f32 to vector<8x1xf32>
    %24 = arith.addf %21, %23 : vector<8x1xf32>
    %c0_17 = arith.constant 0 : index
    %c0_18 = arith.constant 0 : index
    %25 = vector.load %arg8[%c0_17, %c0_18] : memref<8x1xf32, #tpu.memory_space<vmem>>, vector<8x1xf32>
    tpu.vector_store %arg8[%c0_17, %c0_18], %24 {strides = array<i32>} : memref<8x1xf32, #tpu.memory_space<vmem>>, vector<8x1xf32>,
    return
  }
  func.func @transform_0(%arg0: i32) -> (i32, i32) {
    %c0_i32 = arith.constant 0 : i32
    %c0_i32_0 = arith.constant 0 : i32
    return %arg0, %c0_i32 : i32, i32
  }
  func.func @transform_1(%arg0: i32) -> (i32, i32) {
    %c0_i32 = arith.constant 0 : i32
    %c0_i32_0 = arith.constant 0 : i32
    %c0_i32_1 = arith.constant 0 : i32
    return %c0_i32, %c0_i32_0 : i32, i32
  }
  func.func @transform_2(%arg0: i32) -> (i32, i32) {
    %c0_i32 = arith.constant 0 : i32
    %c0_i32_0 = arith.constant 0 : i32
    %c0_i32_1 = arith.constant 0 : i32
    return %c0_i32, %c0_i32_0 : i32, i32
  }
  func.func @transform_3(%arg0: i32) -> (i32, i32) {
    %c0_i32 = arith.constant 0 : i32
    %c0_i32_0 = arith.constant 0 : i32
    %c0_i32_1 = arith.constant 0 : i32
    return %c0_i32, %c0_i32_0 : i32, i32
  }
  func.func @transform_4(%arg0: i32) -> (i32, i32) {
    %c0_i32 = arith.constant 0 : i32
    %c0_i32_0 = arith.constant 0 : i32
    %c0_i32_1 = arith.constant 0 : i32
    return %c0_i32, %c0_i32_0 : i32, i32
  }
  func.func @transform_5(%arg0: i32) -> (i32, i32) {
    %c0_i32 = arith.constant 0 : i32
    %c0_i32_0 = arith.constant 0 : i32
    %c0_i32_1 = arith.constant 0 : i32
    return %c0_i32, %c0_i32_0 : i32, i32
  }
  func.func @transform_6(%arg0: i32) -> (i32, i32) {
    %c0_i32 = arith.constant 0 : i32
    %c0_i32_0 = arith.constant 0 : i32
    %c0_i32_1 = arith.constant 0 : i32
    return %c0_i32, %c0_i32_0 : i32, i32
  }
  func.func @transform_7(%arg0: i32) -> (i32, i32) {
    %c0_i32 = arith.constant 0 : i32
    %c0_i32_0 = arith.constant 0 : i32
    return %arg0, %c0_i32 : i32, i32
  }
}

</mosaic_0001>

<llo_original>
// kernel: tpu_custom_call.1
$region0: #{tpu_custom_call.1}
  #allocation0 [shape = 'u32[]', space=smem, size = 0x4, offset = 0x4, fixed_abs, tag = 'smem constant byte address 0x4 - core index']
  #allocation1 [shape = 'u32[144,128]{1,0:T(1,128)}', space=vmem, size = 0x12000, scoped, tag = 'internal scratch']
  #allocation2 [shape = 'f32[1,1]{1,0:T(1,128)S(6)}', space=smem, size = 0x200, scoped, tag = 'scoped memory for tpu_custom_call.1']
  %s0 = inlined_call_operand.hbm [shape: f32[8,8], index: 0, kind: input, shape index: {}]
  %s1 = inlined_call_operand.vmem [shape: bf16[8,128], index: 1, kind: input, shape index: {}]
  %s2 = inlined_call_operand.vmem [shape: f32[1,128], index: 2, kind: input, shape index: {}]
  %s3 = inlined_call_operand.hbm [shape: bf16[128,128], index: 3, kind: input, shape index: {}]
  %s4 = inlined_call_operand.vmem [shape: f32[1,128], index: 4, kind: input, shape index: {}]
  %s5 = inlined_call_operand.vmem [shape: f32[1,128], index: 5, kind: input, shape index: {}]
  %s6 = inlined_call_operand.<no memory space> [shape: f32[1,1], index: 6, kind: input, shape index: {}]
  %s7 = inlined_call_operand.vmem [shape: f32[8,1], index: 7, kind: output, shape index: {}]
  %s8 = sld [smem:[#allocation0]]
  $region46: #{tpu_custom_call.1} parent=0
    _
  %s10 = ssub.s32 1, %s8
  %s11 = scalar_select 0, %s10, %s8
  %12 = sst [smem:[#allocation2]] %s6
  $region1: #{tpu_custom_call.1} parent=0
    #allocation3 [shape = 'u8[4096]{0}', space=vmem, size = 0x1000, scoped, tag = 'input window, operand 0, single buffered']
    #allocation4 [shape = 's32[1]{0}', space=sflag, size = 0x4, scoped, tag = 'scoped memory for tpu_custom_call.1']
    #allocation5 [shape = 'u8[32768]{0}', space=vmem, size = 0x8000, scoped, tag = 'input window, operand 3, single buffered']
    #allocation6 [shape = 's32[1]{0}', space=sflag, size = 0x4, scoped, tag = 'scoped memory for tpu_custom_call.1']
    %13 = vsyncpa [#allocation4], 0
    %14 = vsyncpa [#allocation6], 0
    // Predicated region
    $region2: #{tpu_custom_call.1} parent=1 // pred_check
      _
    $region3: #{tpu_custom_call.1} parent=1 // pred_check_branch
      %16 = sbr.rel (0) target = $region5
    $region4: #{tpu_custom_call.1} parent=1 // pred_region
      %s18 = ssub.s32 128, 128
      %19 = vsyncadd [#allocation4], %s18
      %s21 = sshll.u32 [#allocation3], 4
      %s22 = int_to_ptr.vmem [resolvable:$true] %s21
      %24 = dma.hbm_to_vmem [thread:$0]  %s0, 128, %s22, [#allocation4]
    $region5: #{tpu_custom_call.1} parent=1 // pred_fallthru
      _
    // Predicated region
    $region6: #{tpu_custom_call.1} parent=1 // pred_check
      _
    $region7: #{tpu_custom_call.1} parent=1 // pred_check_branch
      %26 = sbr.rel (0) target = $region9
    $region8: #{tpu_custom_call.1} parent=1 // pred_region
      _
    $region9: #{tpu_custom_call.1} parent=1 // pred_fallthru
      _
    // Predicated region
    $region10: #{tpu_custom_call.1} parent=1 // pred_check
      _
    $region11: #{tpu_custom_call.1} parent=1 // pred_check_branch
      %28 = sbr.rel (0) target = $region13
    $region12: #{tpu_custom_call.1} parent=1 // pred_region
      _
    $region13: #{tpu_custom_call.1} parent=1 // pred_fallthru
      _
    // Predicated region
    $region14: #{tpu_custom_call.1} parent=1 // pred_check
      _
    $region15: #{tpu_custom_call.1} parent=1 // pred_check_branch
      %30 = sbr.rel (0) target = $region17
    $region16: #{tpu_custom_call.1} parent=1 // pred_region
      %s32 = ssub.s32 1024, 1024
      %33 = vsyncadd [#allocation6], %s32
      %s34 = sshll.u32 [#allocation5], 4
      %s35 = int_to_ptr.vmem [resolvable:$true] %s34
      %40 = dma.hbm_to_vmem [thread:$0]  %s3, 1024, %s35, [#allocation6], 64, 64, 4
    $region17: #{tpu_custom_call.1} parent=1 // pred_fallthru
      _
    // Predicated region
    $region18: #{tpu_custom_call.1} parent=1 // pred_check
      _
    $region19: #{tpu_custom_call.1} parent=1 // pred_check_branch
      %42 = sbr.rel (0) target = $region21
    $region20: #{tpu_custom_call.1} parent=1 // pred_region
      _
    $region21: #{tpu_custom_call.1} parent=1 // pred_fallthru
      _
    // Predicated region
    $region22: #{tpu_custom_call.1} parent=1 // pred_check
      _
    $region23: #{tpu_custom_call.1} parent=1 // pred_check_branch
      %44 = sbr.rel (0) target = $region25
    $region24: #{tpu_custom_call.1} parent=1 // pred_region
      _
    $region25: #{tpu_custom_call.1} parent=1 // pred_fallthru
      _
    // Predicated region
    $region26: #{tpu_custom_call.1} parent=1 // pred_check
      _
    $region27: #{tpu_custom_call.1} parent=1 // pred_check_branch
      %46 = sbr.rel (0) target = $region29
    $region28: #{tpu_custom_call.1} parent=1 // pred_region
      _
    $region29: #{tpu_custom_call.1} parent=1 // pred_fallthru
      _
    // Predicated region
    $region30: #{tpu_custom_call.1} parent=1 // pred_check
      _
    $region31: #{tpu_custom_call.1} parent=1 // pred_check_branch
      %48 = sbr.rel (0) target = $region33
    $region32: #{tpu_custom_call.1} parent=1 // pred_region
      %49 = dma.done [#allocation4], 128
    $region33: #{tpu_custom_call.1} parent=1 // pred_fallthru
      _
    // Predicated region
    $region34: #{tpu_custom_call.1} parent=1 // pred_check
      _
    $region35: #{tpu_custom_call.1} parent=1 // pred_check_branch
      %51 = sbr.rel (0) target = $region37
    $region36: #{tpu_custom_call.1} parent=1 // pred_region
      %52 = dma.done [#allocation6], 1024
    $region37: #{tpu_custom_call.1} parent=1 // pred_fallthru
      _
    %v54 = vld [vmem:[#allocation3] sm:$0xff]
    %v55 = vpack.c.bf16 %v54, %v54
    %v56 = vld [vmem:[%s1] sm:$0xf]
    %v57 = vld [vmem:[%s2] sm:$0x1]
    %v59 = vlaneseq
    %v60 = vshrl.u32 %v59, 7
    %v61 = vsub.s32 0, %v60
    %v62 = vrot.slane %v57, %v61
    %vm64 = vcmask 64512
    %v66 = vsel %vm64, %v55, 0
    %vm68 = vcmask 1043456
    %v70 = vsel %vm68, %v56, 0
    %72 = vmatprep.subr.bf16.mxu0 0
    %73 = vmatpush1.bf16.msra.mxu0 %v70
    %74 = vmatprep.subr.bf16.mxu0 0
    %75 = vmatpush1.bf16.msra.mxu0 0
    %76 = vmatprep.subr.bf16.mxu0 0
    %77 = vmatpush1.bf16.msra.mxu0 0
    %78 = vmatprep.subr.bf16.mxu0 0
    %79 = vmatpush1.bf16.msra.mxu0 0
    %80 = vmatprep.subr.bf16.mxu0 0
    %81 = vmatpush1.bf16.msra.mxu0 0
    %82 = vmatprep.subr.bf16.mxu0 0
    %83 = vmatpush1.bf16.msra.mxu0 0
    %84 = vmatprep.subr.bf16.mxu0 0
    %85 = vmatpush1.bf16.msra.mxu0 0
    %86 = vmatprep.subr.bf16.mxu0 0
    %87 = vmatpush1.bf16.msra.mxu0 0
    %88 = vmatprep.subr.bf16.mxu0 0
    %89 = vmatpush1.bf16.msra.mxu0 0
    %90 = vmatprep.subr.bf16.mxu0 0
    %91 = vmatpush1.bf16.msra.mxu0 0
    %92 = vmatprep.subr.bf16.mxu0 0
    %93 = vmatpush1.bf16.msra.mxu0 0
    %94 = vmatprep.subr.bf16.mxu0 0
    %95 = vmatpush1.bf16.msra.mxu0 0
    %96 = vmatprep.subr.bf16.mxu0 0
    %97 = vmatpush1.bf16.msra.mxu0 0
    %98 = vmatprep.subr.bf16.mxu0 0
    %99 = vmatpush1.bf16.msra.mxu0 0
    %100 = vmatprep.subr.bf16.mxu0 0
    %101 = vmatpush1.bf16.msra.mxu0 0
    %102 = vmatprep.subr.bf16.mxu0 0
    %103 = vmatpush1.bf16.msra.mxu0 0
    %104 = vmatprep.mubr.bf16.mxu0 0
    %105 = vmatmul.mubr.bf16.gmra.mrb[0].mxu0 %v66
    %v106 = vpop.f32.mrb[0].mxu0
    %v107 = vadd.f32 %v62, %v106
    %v108 = vpop.f32.mrb[0].mxu0
    %v109 = vpop.f32.mrb[0].mxu0
    %v110 = vpop.f32.mrb[0].mxu0
    %111 = vdwg.mxu0
    %v112 = vmax.f32 %v107, 0.0
    %v113 = vpack.c.bf16 %v112, %v112
    %v114 = vld [vmem:[#allocation5] sm:$0xf]
    %v115 = vld [vmem:[#allocation5 + $0x4] sm:$0xf]
    %v116 = vld [vmem:[#allocation5 + $0x8] sm:$0xf]
    %v117 = vld [vmem:[#allocation5 + $0xc] sm:$0xf]
    %v118 = vld [vmem:[#allocation5 + $0x10] sm:$0xf]
    %v119 = vld [vmem:[#allocation5 + $0x14] sm:$0xf]
    %v120 = vld [vmem:[#allocation5 + $0x18] sm:$0xf]
    %v121 = vld [vmem:[#allocation5 + $0x1c] sm:$0xf]
    %v122 = vld [vmem:[#allocation5 + $0x20] sm:$0xf]
    %v123 = vld [vmem:[#allocation5 + $0x24] sm:$0xf]
    %v124 = vld [vmem:[#allocation5 + $0x28] sm:$0xf]
    %v125 = vld [vmem:[#allocation5 + $0x2c] sm:$0xf]
    %v126 = vld [vmem:[#allocation5 + $0x30] sm:$0xf]
    %v127 = vld [vmem:[#allocation5 + $0x34] sm:$0xf]
    %v128 = vld [vmem:[#allocation5 + $0x38] sm:$0xf]
    %v129 = vld [vmem:[#allocation5 + $0x3c] sm:$0xf]
    %v130 = vld [vmem:[%s4] sm:$0x1]
    %v132 = vlaneseq
    %v133 = vshrl.u32 %v132, 7
    %v134 = vsub.s32 0, %v133
    %v135 = vrot.slane %v130, %v134
    %v153 = vunpack.c.l.b16 %v114
    %v154 = vunpack.c.l.b16 %v115
    %v155 = vunpack.c.l.b16 %v116
    %v156 = vunpack.c.l.b16 %v117
    %v157 = vunpack.c.l.b16 %v118
    %v158 = vunpack.c.l.b16 %v119
    %v159 = vunpack.c.l.b16 %v120
    %v160 = vunpack.c.l.b16 %v121
    %v161 = vunpack.c.l.b16 %v122
    %v162 = vunpack.c.l.b16 %v123
    %v163 = vunpack.c.l.b16 %v124
    %v164 = vunpack.c.l.b16 %v125
    %v165 = vunpack.c.l.b16 %v126
    %v166 = vunpack.c.l.b16 %v127
    %v167 = vunpack.c.l.b16 %v128
    %v168 = vunpack.c.l.b16 %v129
    %v169 = vpack.c.b16 %v154, %v153
    %v170 = vpack.c.b16 %v156, %v155
    %v171 = vpack.c.b16 %v158, %v157
    %v172 = vpack.c.b16 %v160, %v159
    %v173 = vpack.c.b16 %v162, %v161
    %v174 = vpack.c.b16 %v164, %v163
    %v175 = vpack.c.b16 %v166, %v165
    %v176 = vpack.c.b16 %v168, %v167
    %185 = vmatprep.subr.bf16.mxu0 0
    %186 = vmatpush1.bf16.msra.mxu0 %v169
    %187 = vmatprep.subr.bf16.mxu0 0
    %188 = vmatpush1.bf16.msra.mxu0 %v170
    %189 = vmatprep.subr.bf16.mxu0 0
    %190 = vmatpush1.bf16.msra.mxu0 %v171
    %191 = vmatprep.subr.bf16.mxu0 0
    %192 = vmatpush1.bf16.msra.mxu0 %v172
    %193 = vmatprep.subr.bf16.mxu0 0
    %194 = vmatpush1.bf16.msra.mxu0 %v173
    %195 = vmatprep.subr.bf16.mxu0 0
    %196 = vmatpush1.bf16.msra.mxu0 %v174
    %197 = vmatprep.subr.bf16.mxu0 0
    %198 = vmatpush1.bf16.msra.mxu0 %v175
    %199 = vmatprep.subr.bf16.mxu0 0
    %200 = vmatpush1.bf16.msra.mxu0 %v176
    %201 = vmatprep.subr.bf16.mxu0 0
    %202 = vmatpush1.bf16.msra.mxu0 0
    %203 = vmatprep.subr.bf16.mxu0 0
    %204 = vmatpush1.bf16.msra.mxu0 0
    %205 = vmatprep.subr.bf16.mxu0 0
    %206 = vmatpush1.bf16.msra.mxu0 0
    %207 = vmatprep.subr.bf16.mxu0 0
    %208 = vmatpush1.bf16.msra.mxu0 0
    %209 = vmatprep.subr.bf16.mxu0 0
    %210 = vmatpush1.bf16.msra.mxu0 0
    %211 = vmatprep.subr.bf16.mxu0 0
    %212 = vmatpush1.bf16.msra.mxu0 0
    %213 = vmatprep.subr.bf16.mxu0 0
    %214 = vmatpush1.bf16.msra.mxu0 0
    %215 = vmatprep.subr.bf16.mxu0 0
    %216 = vmatpush1.bf16.msra.mxu0 0
    %217 = vmatprep.mubr.bf16.mxu0 0
    %218 = vmatmul.mubr.bf16.gmra.mrb[0].mxu0 %v113
    %v219 = vpop.f32.mrb[0].mxu0
    %v220 = vadd.f32 %v135, %v219
    %v221 = vpop.f32.mrb[0].mxu0
    %v222 = vpop.f32.mrb[0].mxu0
    %v223 = vpop.f32.mrb[0].mxu0
    %224 = vdwg.mxu0
    %v225 = vmax.f32 %v220, 0.0
    %v226 = vld [vmem:[%s5] sm:$0x1]
    %v228 = vlaneseq
    %v229 = vshrl.u32 %v228, 7
    %v230 = vsub.s32 0, %v229
    %v231 = vrot.slane %v226, %v230
    %v233 = vmul.f32 %v225, %v231
    %234 = vadd.xlane.f32.xlu0 %v233
    %v235 = vpop.xlane.xlu0 %234
    %s236 = sld [smem:[#allocation2]]
    %v237 = vstv %s236
    %v238 = vadd.f32 %v235, %v237
    %vm239 = vcmask 7168
    %240 = vst.msk [vmem:[%s7] sm:$0xff] %vm239, %v238
    // Predicated region
    $region38: #{tpu_custom_call.1} parent=1 // pred_check
      _
    $region39: #{tpu_custom_call.1} parent=1 // pred_check_branch
      %242 = sbr.rel (0) target = $region41
    $region40: #{tpu_custom_call.1} parent=1 // pred_region
      _
    $region41: #{tpu_custom_call.1} parent=1 // pred_fallthru
      _
    // Predicated region
    $region42: #{tpu_custom_call.1} parent=1 // pred_check
      _
    $region43: #{tpu_custom_call.1} parent=1 // pred_check_branch
      %244 = sbr.rel (0) target = $region45
    $region44: #{tpu_custom_call.1} parent=1 // pred_region
      _
    $region45: #{tpu_custom_call.1} parent=1 // pred_fallthru
      _
    %245 = vsyncpa [#allocation4], 1
    %246 = vsyncpa [#allocation6], 1

</llo_original>
